<compile_context>
chip_gen: v5e
topology: v5e:2x2
jax: 0.10.0
libtpu: 0.0.40
codegen_flags: <defaults>
</compile_context>

<pallas_src>
import functools

import jax
import jax.numpy as jnp
import numpy as np
from jax.experimental import pallas as pl
from jax.experimental.pallas import tpu as pltpu

LN_EPS = 1e-5  # torch.nn.LayerNorm default


# ----------------------------------------------------------------------------
# Pallas kernel: fused K-tap Conv1d + bias + ReLU + LayerNorm over channels
# ----------------------------------------------------------------------------
def _conv_ln_kernel(x_ref, w_ref, p_ref, o_ref, *, K, stride):
    """Fused Conv1d (K taps) + bias + ReLU + LayerNorm(C).

    x_ref: [TB, stride, L_phase, C_in]  f32, channels-last, zero-padded and
                                        de-interleaved into `stride` phases
                                        (phase p row q == x_pad[stride*q + p])
    w_ref: [K, C_in, C_out]             bf16 (MXU-native inputs)
    p_ref: [3, C_out]                   f32  (conv bias, LN gamma, LN beta)
    o_ref: [TB, L_out, C_out]           f32
    """
    TB, Lout, Cout = o_ref.shape
    M = TB * Lout

    acc = jnp.zeros((M, Cout), jnp.float32)
    for k in range(K):                       # K in {1, 3}: static unroll
        ph = k % stride                      # which phase holds this tap
        off = k // stride                    # static row offset inside phase
        # Gather tap k for every output position of every batch row in this
        # tile; fold batch into the matmul M dimension.  All slices below are
        # static (no strided / dynamic ref indexing).
        taps = [x_ref[b, ph, off:off + Lout, :] for b in range(TB)]
        xk = taps[0] if TB == 1 else jnp.concatenate(taps, axis=0)   # [M, C_in]
        acc = acc + jnp.dot(xk.astype(jnp.bfloat16), w_ref[k],
                            preferred_element_type=jnp.float32)      # MXU

    pvec = p_ref[...]
    bias, gamma, beta = pvec[0:1], pvec[1:2], pvec[2:3]   # each [1, C_out]
    acc = acc + bias
    acc = jnp.maximum(acc, 0.0)                           # ReLU
    # LayerNorm over the channel (lane) axis, f32 math.
    mean = jnp.mean(acc, axis=-1, keepdims=True)
    ctr = acc - mean
    var = jnp.mean(ctr * ctr, axis=-1, keepdims=True)
    y = ctr * jax.lax.rsqrt(var + LN_EPS)
    y = (y * gamma + beta).astype(o_ref.dtype)
    for b in range(TB):
        o_ref[b] = y[b * Lout:(b + 1) * Lout, :]


def conv_block(x_nlc, w, b, gamma, beta, *, stride, padding, batch_tile=None):
    """ConvBlock.forward: Conv1d -> ReLU -> LayerNorm(channels). NLC in / NLC out."""
    B, L, Cin = x_nlc.shape
    Cout, Cin_w, K = w.shape
    assert Cin_w == Cin
    Lout = (L + 2 * padding - K) // stride + 1
    Lpad = L + 2 * padding

    x_pad = jnp.pad(x_nlc, ((0, 0), (padding, padding), (0, 0))) if padding else x_nlc
    # De-interleave into `stride` phases so the kernel never needs a strided
    # ref read: phase p, row q  <->  x_pad[:, stride*q + p, :].
    Lph = -(-Lpad // stride)                      # ceil(Lpad / stride)
    extra = stride * Lph - Lpad
    if extra:
        x_pad = jnp.pad(x_pad, ((0, 0), (0, extra), (0, 0)))
    x_ph = x_pad.reshape(B, Lph, stride, Cin).transpose(0, 2, 1, 3)  # [B, s, Lph, Cin]

    # Weights as [K, C_in, C_out] in bf16 (halves weight DMA, MXU-native).
    w_kic = jnp.transpose(w, (2, 1, 0)).astype(jnp.bfloat16)
    # Bias / LN-gamma / LN-beta fused into one small operand (one DMA descriptor).
    p = jnp.stack([b, gamma, beta], axis=0).astype(jnp.float32)

    # Fold batch rows into the matmul M dim when L_out is small (keeps the MXU
    # fed); for long sequences batch_tile==1 and the grid parallelizes over B.
    if batch_tile is None:
        batch_tile = max(1, min(B, 512 // max(Lout, 1)))
        while B % batch_tile:
            batch_tile -= 1
    TB = batch_tile
    # TODO(synk): for very long sequences also tile L_out (overlapping input
    # windows) instead of keeping the full padded L in one block.

    kernel = functools.partial(_conv_ln_kernel, K=K, stride=stride)
    out = pl.pallas_call(
        kernel,
        out_shape=jax.ShapeDtypeStruct((B, Lout, Cout), x_nlc.dtype),
        grid=(B // TB,),
        in_specs=[
            pl.BlockSpec((TB, stride, Lph, Cin), lambda i: (i, 0, 0, 0)),
            pl.BlockSpec((K, Cin, Cout), lambda i: (0, 0, 0)),
            pl.BlockSpec((3, Cout), lambda i: (0, 0)),
        ],
        # Output last dim is C_out: lane-dense (unmasked stores) whenever
        # hidden_dim is a multiple of 128 (typical real sizes).
        out_specs=pl.BlockSpec((TB, Lout, Cout), lambda i: (i, 0, 0)),
        compiler_params=pltpu.CompilerParams(
            dimension_semantics=("parallel",),
            vmem_limit_bytes=32 * 1024 * 1024,
        ),
    )(x_ph, w_kic, p)
    return out


# ----------------------------------------------------------------------------
# Pure-JAX reference ConvBlock (correctness check only), NLC in / NLC out
# ----------------------------------------------------------------------------
def conv_block_ref(x_nlc, w, b, gamma, beta, *, stride, padding, batch_tile=None):
    x = jnp.transpose(x_nlc, (0, 2, 1)).astype(jnp.float32)     # [B, C, L]
    out = jax.lax.conv_general_dilated(
        x, w, window_strides=(stride,), padding=[(padding, padding)],
        dimension_numbers=("NCH", "OIH", "NCH"),
        precision=jax.lax.Precision.HIGHEST)
    out = out + b[None, :, None]
    out = jnp.maximum(out, 0.0)
    mean = jnp.mean(out, axis=1, keepdims=True)
    var = jnp.mean((out - mean) ** 2, axis=1, keepdims=True)
    y = (out - mean) * jax.lax.rsqrt(var + LN_EPS)
    y = y * gamma[None, :, None] + beta[None, :, None]
    return jnp.transpose(y, (0, 2, 1))                          # back to NLC


# ----------------------------------------------------------------------------
# AudioSub forward (mirrors the PyTorch module exactly), channels-last inside
# ----------------------------------------------------------------------------
def interpolate_nearest(x_nlc, size):
    """torch.nn.functional.interpolate(mode='nearest') on channels-last [B, L, C]."""
    L = x_nlc.shape[1]
    idx = (np.arange(size) * L) // size                         # floor(j * L_in / L_out)
    return x_nlc[:, idx, :]


def init_audio_sub_params(key, hidden_dim, num_layers=1, kernel_size=3):
    nL = num_layers - 1

    def convblock_params(k, cin, cout, K):
        k1, k2, k3, k4 = jax.random.split(k, 4)
        w = jax.random.normal(k1, (cout, cin, K), jnp.float32) / np.sqrt(cin * K)
        b = 0.1 * jax.random.normal(k2, (cout,), jnp.float32)
        gamma = 1.0 + 0.1 * jax.random.normal(k3, (cout,), jnp.float32)
        beta = 0.1 * jax.random.normal(k4, (cout,), jnp.float32)
        return (w, b, gamma, beta)

    keys = iter(jax.random.split(key, 3 * nL + 2 + 4))
    params = {
        "main": [convblock_params(next(keys), hidden_dim, hidden_dim, kernel_size)
                 for _ in range(nL)],
        "pre": [convblock_params(next(keys), hidden_dim, hidden_dim, kernel_size)
                for _ in range(nL)],
        "micro": [convblock_params(
            next(keys),
            hidden_dim + (hidden_dim if i > 0 else 0) + (hidden_dim if i < nL else 0),
            hidden_dim, kernel_size) for i in range(nL + 1)],
        "macro": convblock_params(next(keys), hidden_dim * (nL + 1), hidden_dim, 1),
    }
    return params


def audio_sub_forward(x_bcl, params, *, num_layers, conv_block_fn, kernel_size=3):
    nL = num_layers - 1
    pad = (kernel_size - 1) // 2

    # Channels-last [B, L, C] end-to-end; convert at the module boundary only.
    x = jnp.transpose(x_bcl, (0, 2, 1))

    saved = [x]
    for i in range(nL):
        saved.append(conv_block_fn(saved[-1], *params["main"][i], stride=2, padding=pad))

    compressed = []
    for i in range(nL + 1):
        parts = []
        if i < nL:
            parts.append(interpolate_nearest(saved[i + 1], saved[i].shape[1]))
        parts.append(saved[i])
        if i > 0:
            parts.append(conv_block_fn(saved[i - 1], *params["pre"][i - 1],
                                       stride=2, padding=pad))
        cat = jnp.concatenate(parts, axis=-1)
        compressed.append(conv_block_fn(cat, *params["micro"][i], stride=1, padding=pad))
    # NOTE: as in the reference PyTorch forward, `compressed` is computed but the
    # return value only uses the (upsampled) saved tensors; under jit XLA may DCE
    # the unused branch, which does not change the output.

    up = jnp.concatenate([interpolate_nearest(t, saved[0].shape[1]) for t in saved],
                         axis=-1)
    out = conv_block_fn(up, *params["macro"], stride=1, padding=0)
    return jnp.transpose(out, (0, 2, 1))                        # back to [B, C, L]


# ----------------------------------------------------------------------------
if __name__ == "__main__":
    B, hidden_dim, L = 2, 32, 16
    num_layers = 2          # module-level num_layers (internal nL = 1)

    key = jax.random.PRNGKey(0)
    kx, kp = jax.random.split(key)
    x = jax.random.normal(kx, (B, hidden_dim, L), jnp.float32)
    params = init_audio_sub_params(kp, hidden_dim, num_layers=num_layers)

    fwd = jax.jit(functools.partial(
        audio_sub_forward, num_layers=num_layers, conv_block_fn=conv_block))
    out = jax.block_until_ready(fwd(x, params))
    assert out.shape == (B, hidden_dim, L), out.shape
    assert out.dtype == jnp.float32

    # Correctness vs. a plain-JAX reference (tolerance covers bf16 MXU inputs).
    ref_fwd = jax.jit(functools.partial(
        audio_sub_forward, num_layers=num_layers, conv_block_fn=conv_block_ref))
    ref = jax.block_until_ready(ref_fwd(x, params))
    np.testing.assert_allclose(np.asarray(out), np.asarray(ref), atol=5e-2, rtol=5e-2)

    print("KERNEL_OK")
</pallas_src>

<mosaic_0001>
module attributes {stable_mosaic.version = 11 : i64} {
  func.func @_conv_ln_kernel(%arg0: i32, %arg1: memref<2x2x9x32xf32, #tpu.memory_space<vmem>>, %arg2: memref<3x32x32xbf16, #tpu.memory_space<vmem>>, %arg3: memref<3x32xf32, #tpu.memory_space<vmem>>, %arg4: memref<2x8x32xf32, #tpu.memory_space<vmem>>) attributes {dimension_semantics = [#tpu.dimension_semantics<parallel>], iteration_bounds = array<i64: 1>, scalar_prefetch = 0 : i64, scratch_operands = 0 : i64, tpu.core_type = #tpu.core_type<tc>, window_params = [{transform_indices = @transform_0, window_bounds = array<i64: 2, 2, 9, 32>}, {pipeline_mode = #tpu.pipeline_mode<synchronous>, transform_indices = @transform_1, window_bounds = array<i64: 3, 32, 32>}, {pipeline_mode = #tpu.pipeline_mode<synchronous>, transform_indices = @transform_2, window_bounds = array<i64: 3, 32>}, {transform_indices = @transform_3, window_bounds = array<i64: 2, 8, 32>}]} {
    %cst = arith.constant 0.000000e+00 : f32
    %0 = vector.broadcast %cst : f32 to vector<16x32xf32>
    %c0 = arith.constant 0 : index
    %c0_0 = arith.constant 0 : index
    %c0_1 = arith.constant 0 : index
    %c0_2 = arith.constant 0 : index
    %1 = vector.load %arg1[%c0, %c0_0, %c0_1, %c0_2] : memref<2x2x9x32xf32, #tpu.memory_space<vmem>>, vector<1x1x8x32xf32>
    %2 = vector.shape_cast %1 : vector<1x1x8x32xf32> to vector<8x32xf32>
    %c1 = arith.constant 1 : index
    %c0_3 = arith.constant 0 : index
    %c0_4 = arith.constant 0 : index
    %c0_5 = arith.constant 0 : index
    %3 = vector.load %arg1[%c1, %c0_3, %c0_4, %c0_5] : memref<2x2x9x32xf32, #tpu.memory_space<vmem>>, vector<1x1x8x32xf32>
    %4 = vector.shape_cast %3 : vector<1x1x8x32xf32> to vector<8x32xf32>
    %5 = tpu.concatenate %2, %4 in 0 : vector<8x32xf32>, vector<8x32xf32> -> vector<16x32xf32>
    %6 = arith.truncf %5 : vector<16x32xf32> to vector<16x32xbf16>
    %c0_6 = arith.constant 0 : index
    %c0_7 = arith.constant 0 : index
    %c0_8 = arith.constant 0 : index
    %7 = vector.load %arg2[%c0_6, %c0_7, %c0_8] : memref<3x32x32xbf16, #tpu.memory_space<vmem>>, vector<1x32x32xbf16>
    %8 = vector.shape_cast %7 : vector<1x32x32xbf16> to vector<32x32xbf16>
    %cst_9 = arith.constant dense<0.000000e+00> : vector<16x32xf32>
    %9 = tpu.matmul %6, %8, %cst_9 {dimension_numbers = #tpu.dot_dimension_numbers<[1], [0], [0], [1], [0, 0, 1, 1], [], []>} : vector<16x32xbf16>, vector<32x32xbf16>, vector<16x32xf32> -> vector<16x32xf32>
    %10 = arith.addf %0, %9 : vector<16x32xf32>
    %c0_10 = arith.constant 0 : index
    %c1_11 = arith.constant 1 : index
    %c0_12 = arith.constant 0 : index
    %c0_13 = arith.constant 0 : index
    %11 = vector.load %arg1[%c0_10, %c1_11, %c0_12, %c0_13] : memref<2x2x9x32xf32, #tpu.memory_space<vmem>>, vector<1x1x8x32xf32>
    %12 = vector.shape_cast %11 : vector<1x1x8x32xf32> to vector<8x32xf32>
    %c1_14 = arith.constant 1 : index
    %c1_15 = arith.constant 1 : index
    %c0_16 = arith.constant 0 : index
    %c0_17 = arith.constant 0 : index
    %13 = vector.load %arg1[%c1_14, %c1_15, %c0_16, %c0_17] : memref<2x2x9x32xf32, #tpu.memory_space<vmem>>, vector<1x1x8x32xf32>
    %14 = vector.shape_cast %13 : vector<1x1x8x32xf32> to vector<8x32xf32>
    %15 = tpu.concatenate %12, %14 in 0 : vector<8x32xf32>, vector<8x32xf32> -> vector<16x32xf32>
    %16 = arith.truncf %15 : vector<16x32xf32> to vector<16x32xbf16>
    %c1_18 = arith.constant 1 : index
    %c0_19 = arith.constant 0 : index
    %c0_20 = arith.constant 0 : index
    %17 = vector.load %arg2[%c1_18, %c0_19, %c0_20] : memref<3x32x32xbf16, #tpu.memory_space<vmem>>, vector<1x32x32xbf16>
    %18 = vector.shape_cast %17 : vector<1x32x32xbf16> to vector<32x32xbf16>
    %cst_21 = arith.constant dense<0.000000e+00> : vector<16x32xf32>
    %19 = tpu.matmul %16, %18, %cst_21 {dimension_numbers = #tpu.dot_dimension_numbers<[1], [0], [0], [1], [0, 0, 1, 1], [], []>} : vector<16x32xbf16>, vector<32x32xbf16>, vector<16x32xf32> -> vector<16x32xf32>
    %20 = arith.addf %10, %19 : vector<16x32xf32>
    %c0_22 = arith.constant 0 : index
    %c0_23 = arith.constant 0 : index
    %c1_24 = arith.constant 1 : index
    %c0_25 = arith.constant 0 : index
    %21 = vector.load %arg1[%c0_22, %c0_23, %c1_24, %c0_25] : memref<2x2x9x32xf32, #tpu.memory_space<vmem>>, vector<1x1x8x32xf32>
    %22 = vector.shape_cast %21 : vector<1x1x8x32xf32> to vector<8x32xf32>
    %c1_26 = arith.constant 1 : index
    %c0_27 = arith.constant 0 : index
    %c1_28 = arith.constant 1 : index
    %c0_29 = arith.constant 0 : index
    %23 = vector.load %arg1[%c1_26, %c0_27, %c1_28, %c0_29] : memref<2x2x9x32xf32, #tpu.memory_space<vmem>>, vector<1x1x8x32xf32>
    %24 = vector.shape_cast %23 : vector<1x1x8x32xf32> to vector<8x32xf32>
    %25 = tpu.concatenate %22, %24 in 0 : vector<8x32xf32>, vector<8x32xf32> -> vector<16x32xf32>
    %26 = arith.truncf %25 : vector<16x32xf32> to vector<16x32xbf16>
    %c2 = arith.constant 2 : index
    %c0_30 = arith.constant 0 : index
    %c0_31 = arith.constant 0 : index
    %27 = vector.load %arg2[%c2, %c0_30, %c0_31] : memref<3x32x32xbf16, #tpu.memory_space<vmem>>, vector<1x32x32xbf16>
    %28 = vector.shape_cast %27 : vector<1x32x32xbf16> to vector<32x32xbf16>
    %cst_32 = arith.constant dense<0.000000e+00> : vector<16x32xf32>
    %29 = tpu.matmul %26, %28, %cst_32 {dimension_numbers = #tpu.dot_dimension_numbers<[1], [0], [0], [1], [0, 0, 1, 1], [], []>} : vector<16x32xbf16>, vector<32x32xbf16>, vector<16x32xf32> -> vector<16x32xf32>
    %30 = arith.addf %20, %29 : vector<16x32xf32>
    %c0_33 = arith.constant 0 : index
    %c0_34 = arith.constant 0 : index
    %31 = vector.load %arg3[%c0_33, %c0_34] : memref<3x32xf32, #tpu.memory_space<vmem>>, vector<3x32xf32>
    %32 = vector.extract_strided_slice %31 {offsets = [0, 0], sizes = [1, 32], strides = [1, 1]} : vector<3x32xf32> to vector<1x32xf32>
    %33 = vector.extract_strided_slice %31 {offsets = [1, 0], sizes = [1, 32], strides = [1, 1]} : vector<3x32xf32> to vector<1x32xf32>
    %34 = vector.extract_strided_slice %31 {offsets = [2, 0], sizes = [1, 32], strides = [1, 1]} : vector<3x32xf32> to vector<1x32xf32>
    %35 = vector.broadcast %32 : vector<1x32xf32> to vector<16x32xf32>
    %36 = arith.addf %30, %35 : vector<16x32xf32>
    %cst_35 = arith.constant 0.000000e+00 : f32
    %37 = vector.broadcast %cst_35 : f32 to vector<16x32xf32>
    %38 = arith.maximumf %36, %37 : vector<16x32xf32>
    %cst_36 = arith.constant dense<0.000000e+00> : vector<16xf32>
    %39 = vector.multi_reduction <add>, %38, %cst_36 [1] : vector<16x32xf32> to vector<16xf32>
    %40 = vector.shape_cast %39 : vector<16xf32> to vector<16x1xf32>
    %cst_37 = arith.constant 3.200000e+01 : f32
    %41 = vector.broadcast %cst_37 : f32 to vector<16x1xf32>
    %42 = arith.divf %40, %41 : vector<16x1xf32>
    %43 = vector.broadcast %42 : vector<16x1xf32> to vector<16x32xf32>
    %44 = arith.subf %38, %43 : vector<16x32xf32>
    %45 = arith.mulf %44, %44 : vector<16x32xf32>
    %cst_38 = arith.constant dense<0.000000e+00> : vector<16xf32>
    %46 = vector.multi_reduction <add>, %45, %cst_38 [1] : vector<16x32xf32> to vector<16xf32>
    %47 = vector.shape_cast %46 : vector<16xf32> to vector<16x1xf32>
    %cst_39 = arith.constant 3.200000e+01 : f32
    %48 = vector.broadcast %cst_39 : f32 to vector<16x1xf32>
    %49 = arith.divf %47, %48 : vector<16x1xf32>
    %cst_40 = arith.constant 9.99999974E-6 : f32
    %50 = vector.broadcast %cst_40 : f32 to vector<16x1xf32>
    %51 = arith.addf %49, %50 : vector<16x1xf32>
    %52 = math.rsqrt %51 : vector<16x1xf32>
    %53 = vector.broadcast %52 : vector<16x1xf32> to vector<16x32xf32>
    %54 = arith.mulf %44, %53 : vector<16x32xf32>
    %55 = vector.broadcast %33 : vector<1x32xf32> to vector<16x32xf32>
    %56 = arith.mulf %54, %55 : vector<16x32xf32>
    %57 = vector.broadcast %34 : vector<1x32xf32> to vector<16x32xf32>
    %58 = arith.addf %56, %57 : vector<16x32xf32>
    %59 = vector.extract_strided_slice %58 {offsets = [0, 0], sizes = [8, 32], strides = [1, 1]} : vector<16x32xf32> to vector<8x32xf32>
    %c0_41 = arith.constant 0 : index
    %c0_42 = arith.constant 0 : index
    %c0_43 = arith.constant 0 : index
    %60 = vector.load %arg4[%c0_41, %c0_42, %c0_43] : memref<2x8x32xf32, #tpu.memory_space<vmem>>, vector<1x8x32xf32>
    %61 = vector.shape_cast %60 : vector<1x8x32xf32> to vector<8x32xf32>
    %62 = vector.shape_cast %59 : vector<8x32xf32> to vector<1x8x32xf32>
    tpu.vector_store %arg4[%c0_41, %c0_42, %c0_43], %62 {strides = array<i32>} : memref<2x8x32xf32, #tpu.memory_space<vmem>>, vector<1x8x32xf32>,
    %63 = vector.extract_strided_slice %58 {offsets = [8, 0], sizes = [8, 32], strides = [1, 1]} : vector<16x32xf32> to vector<8x32xf32>
    %c1_44 = arith.constant 1 : index
    %c0_45 = arith.constant 0 : index
    %c0_46 = arith.constant 0 : index
    %64 = vector.load %arg4[%c1_44, %c0_45, %c0_46] : memref<2x8x32xf32, #tpu.memory_space<vmem>>, vector<1x8x32xf32>
    %65 = vector.shape_cast %64 : vector<1x8x32xf32> to vector<8x32xf32>
    %66 = vector.shape_cast %63 : vector<8x32xf32> to vector<1x8x32xf32>
    tpu.vector_store %arg4[%c1_44, %c0_45, %c0_46], %66 {strides = array<i32>} : memref<2x8x32xf32, #tpu.memory_space<vmem>>, vector<1x8x32xf32>,
    return
  }
  func.func @transform_0(%arg0: i32) -> (i32, i32, i32, i32) {
    %c0_i32 = arith.constant 0 : i32
    %c0_i32_0 = arith.constant 0 : i32
    %c0_i32_1 = arith.constant 0 : i32
    %c0_i32_2 = arith.constant 0 : i32
    return %arg0, %c0_i32, %c0_i32_0, %c0_i32_1 : i32, i32, i32, i32
  }
  func.func @transform_1(%arg0: i32) -> (i32, i32, i32) {
    %c0_i32 = arith.constant 0 : i32
    %c0_i32_0 = arith.constant 0 : i32
    %c0_i32_1 = arith.constant 0 : i32
    %c0_i32_2 = arith.constant 0 : i32
    return %c0_i32, %c0_i32_0, %c0_i32_1 : i32, i32, i32
  }
  func.func @transform_2(%arg0: i32) -> (i32, i32) {
    %c0_i32 = arith.constant 0 : i32
    %c0_i32_0 = arith.constant 0 : i32
    %c0_i32_1 = arith.constant 0 : i32
    return %c0_i32, %c0_i32_0 : i32, i32
  }
  func.func @transform_3(%arg0: i32) -> (i32, i32, i32) {
    %c0_i32 = arith.constant 0 : i32
    %c0_i32_0 = arith.constant 0 : i32
    %c0_i32_1 = arith.constant 0 : i32
    return %arg0, %c0_i32, %c0_i32_0 : i32, i32, i32
  }
}

module attributes {stable_mosaic.version = 11 : i64} {
  func.func @_conv_ln_kernel(%arg0: i32, %arg1: memref<2x1x16x64xf32, #tpu.memory_space<vmem>>, %arg2: memref<1x64x32xbf16, #tpu.memory_space<vmem>>, %arg3: memref<3x32xf32, #tpu.memory_space<vmem>>, %arg4: memref<2x16x32xf32, #tpu.memory_space<vmem>>) attributes {dimension_semantics = [#tpu.dimension_semantics<parallel>], iteration_bounds = array<i64: 1>, scalar_prefetch = 0 : i64, scratch_operands = 0 : i64, tpu.core_type = #tpu.core_type<tc>, window_params = [{transform_indices = @transform_0, window_bounds = array<i64: 2, 1, 16, 64>}, {pipeline_mode = #tpu.pipeline_mode<synchronous>, transform_indices = @transform_1, window_bounds = array<i64: 1, 64, 32>}, {pipeline_mode = #tpu.pipeline_mode<synchronous>, transform_indices = @transform_2, window_bounds = array<i64: 3, 32>}, {transform_indices = @transform_3, window_bounds = array<i64: 2, 16, 32>}]} {
    %cst = arith.constant 0.000000e+00 : f32
    %0 = vector.broadcast %cst : f32 to vector<32x32xf32>
    %c0 = arith.constant 0 : index
    %c0_0 = arith.constant 0 : index
    %c0_1 = arith.constant 0 : index
    %c0_2 = arith.constant 0 : index
    %1 = vector.load %arg1[%c0, %c0_0, %c0_1, %c0_2] : memref<2x1x16x64xf32, #tpu.memory_space<vmem>>, vector<1x1x16x64xf32>
    %2 = vector.shape_cast %1 : vector<1x1x16x64xf32> to vector<16x64xf32>
    %c1 = arith.constant 1 : index
    %c0_3 = arith.constant 0 : index
    %c0_4 = arith.constant 0 : index
    %c0_5 = arith.constant 0 : index
    %3 = vector.load %arg1[%c1, %c0_3, %c0_4, %c0_5] : memref<2x1x16x64xf32, #tpu.memory_space<vmem>>, vector<1x1x16x64xf32>
    %4 = vector.shape_cast %3 : vector<1x1x16x64xf32> to vector<16x64xf32>
    %5 = tpu.concatenate %2, %4 in 0 : vector<16x64xf32>, vector<16x64xf32> -> vector<32x64xf32>
    %6 = arith.truncf %5 : vector<32x64xf32> to vector<32x64xbf16>
    %c0_6 = arith.constant 0 : index
    %c0_7 = arith.constant 0 : index
    %c0_8 = arith.constant 0 : index
    %7 = vector.load %arg2[%c0_6, %c0_7, %c0_8] : memref<1x64x32xbf16, #tpu.memory_space<vmem>>, vector<1x64x32xbf16>
    %8 = vector.shape_cast %7 : vector<1x64x32xbf16> to vector<64x32xbf16>
    %cst_9 = arith.constant dense<0.000000e+00> : vector<32x32xf32>
    %9 = tpu.matmul %6, %8, %cst_9 {dimension_numbers = #tpu.dot_dimension_numbers<[1], [0], [0], [1], [0, 0, 1, 1], [], []>} : vector<32x64xbf16>, vector<64x32xbf16>, vector<32x32xf32> -> vector<32x32xf32>
    %10 = arith.addf %0, %9 : vector<32x32xf32>
    %c0_10 = arith.constant 0 : index
    %c0_11 = arith.constant 0 : index
    %11 = vector.load %arg3[%c0_10, %c0_11] : memref<3x32xf32, #tpu.memory_space<vmem>>, vector<3x32xf32>
    %12 = vector.extract_strided_slice %11 {offsets = [0, 0], sizes = [1, 32], strides = [1, 1]} : vector<3x32xf32> to vector<1x32xf32>
    %13 = vector.extract_strided_slice %11 {offsets = [1, 0], sizes = [1, 32], strides = [1, 1]} : vector<3x32xf32> to vector<1x32xf32>
    %14 = vector.extract_strided_slice %11 {offsets = [2, 0], sizes = [1, 32], strides = [1, 1]} : vector<3x32xf32> to vector<1x32xf32>
    %15 = vector.broadcast %12 : vector<1x32xf32> to vector<32x32xf32>
    %16 = arith.addf %10, %15 : vector<32x32xf32>
    %cst_12 = arith.constant 0.000000e+00 : f32
    %17 = vector.broadcast %cst_12 : f32 to vector<32x32xf32>
    %18 = arith.maximumf %16, %17 : vector<32x32xf32>
    %cst_13 = arith.constant dense<0.000000e+00> : vector<32xf32>
    %19 = vector.multi_reduction <add>, %18, %cst_13 [1] : vector<32x32xf32> to vector<32xf32>
    %20 = vector.shape_cast %19 : vector<32xf32> to vector<32x1xf32>
    %cst_14 = arith.constant 3.200000e+01 : f32
    %21 = vector.broadcast %cst_14 : f32 to vector<32x1xf32>
    %22 = arith.divf %20, %21 : vector<32x1xf32>
    %23 = vector.broadcast %22 : vector<32x1xf32> to vector<32x32xf32>
    %24 = arith.subf %18, %23 : vector<32x32xf32>
    %25 = arith.mulf %24, %24 : vector<32x32xf32>
    %cst_15 = arith.constant dense<0.000000e+00> : vector<32xf32>
    %26 = vector.multi_reduction <add>, %25, %cst_15 [1] : vector<32x32xf32> to vector<32xf32>
    %27 = vector.shape_cast %26 : vector<32xf32> to vector<32x1xf32>
    %cst_16 = arith.constant 3.200000e+01 : f32
    %28 = vector.broadcast %cst_16 : f32 to vector<32x1xf32>
    %29 = arith.divf %27, %28 : vector<32x1xf32>
    %cst_17 = arith.constant 9.99999974E-6 : f32
    %30 = vector.broadcast %cst_17 : f32 to vector<32x1xf32>
    %31 = arith.addf %29, %30 : vector<32x1xf32>
    %32 = math.rsqrt %31 : vector<32x1xf32>
    %33 = vector.broadcast %32 : vector<32x1xf32> to vector<32x32xf32>
    %34 = arith.mulf %24, %33 : vector<32x32xf32>
    %35 = vector.broadcast %13 : vector<1x32xf32> to vector<32x32xf32>
    %36 = arith.mulf %34, %35 : vector<32x32xf32>
    %37 = vector.broadcast %14 : vector<1x32xf32> to vector<32x32xf32>
    %38 = arith.addf %36, %37 : vector<32x32xf32>
    %39 = vector.extract_strided_slice %38 {offsets = [0, 0], sizes = [16, 32], strides = [1, 1]} : vector<32x32xf32> to vector<16x32xf32>
    %c0_18 = arith.constant 0 : index
    %c0_19 = arith.constant 0 : index
    %c0_20 = arith.constant 0 : index
    %40 = vector.load %arg4[%c0_18, %c0_19, %c0_20] : memref<2x16x32xf32, #tpu.memory_space<vmem>>, vector<1x16x32xf32>
    %41 = vector.shape_cast %40 : vector<1x16x32xf32> to vector<16x32xf32>
    %42 = vector.shape_cast %39 : vector<16x32xf32> to vector<1x16x32xf32>
    tpu.vector_store %arg4[%c0_18, %c0_19, %c0_20], %42 {strides = array<i32>} : memref<2x16x32xf32, #tpu.memory_space<vmem>>, vector<1x16x32xf32>,
    %43 = vector.extract_strided_slice %38 {offsets = [16, 0], sizes = [16, 32], strides = [1, 1]} : vector<32x32xf32> to vector<16x32xf32>
    %c1_21 = arith.constant 1 : index
    %c0_22 = arith.constant 0 : index
    %c0_23 = arith.constant 0 : index
    %44 = vector.load %arg4[%c1_21, %c0_22, %c0_23] : memref<2x16x32xf32, #tpu.memory_space<vmem>>, vector<1x16x32xf32>
    %45 = vector.shape_cast %44 : vector<1x16x32xf32> to vector<16x32xf32>
    %46 = vector.shape_cast %43 : vector<16x32xf32> to vector<1x16x32xf32>
    tpu.vector_store %arg4[%c1_21, %c0_22, %c0_23], %46 {strides = array<i32>} : memref<2x16x32xf32, #tpu.memory_space<vmem>>, vector<1x16x32xf32>,
    return
  }
  func.func @transform_0(%arg0: i32) -> (i32, i32, i32, i32) {
    %c0_i32 = arith.constant 0 : i32
    %c0_i32_0 = arith.constant 0 : i32
    %c0_i32_1 = arith.constant 0 : i32
    %c0_i32_2 = arith.constant 0 : i32
    return %arg0, %c0_i32, %c0_i32_0, %c0_i32_1 : i32, i32, i32, i32
  }
  func.func @transform_1(%arg0: i32) -> (i32, i32, i32) {
    %c0_i32 = arith.constant 0 : i32
    %c0_i32_0 = arith.constant 0 : i32
    %c0_i32_1 = arith.constant 0 : i32
    %c0_i32_2 = arith.constant 0 : i32
    return %c0_i32, %c0_i32_0, %c0_i32_1 : i32, i32, i32
  }
  func.func @transform_2(%arg0: i32) -> (i32, i32) {
    %c0_i32 = arith.constant 0 : i32
    %c0_i32_0 = arith.constant 0 : i32
    %c0_i32_1 = arith.constant 0 : i32
    return %c0_i32, %c0_i32_0 : i32, i32
  }
  func.func @transform_3(%arg0: i32) -> (i32, i32, i32) {
    %c0_i32 = arith.constant 0 : i32
    %c0_i32_0 = arith.constant 0 : i32
    %c0_i32_1 = arith.constant 0 : i32
    return %arg0, %c0_i32, %c0_i32_0 : i32, i32, i32
  }
}

</mosaic_0001>

<llo_original>
// kernel: audio_sub_forward.2
$region0: #{audio_sub_forward.2}
  #allocation0 [shape = 'u32[]', space=smem, size = 0x4, offset = 0x4, fixed_abs, tag = 'smem constant byte address 0x4 - core index']
  #allocation1 [shape = 'u32[72,128]{1,0:T(1,128)}', space=vmem, size = 0x9000, scoped, tag = 'internal scratch']
  %s0 = inlined_call_operand.vmem [shape: f32[2,2,9,32], index: 0, kind: input, shape index: {}]
  %s1 = inlined_call_operand.vmem [shape: bf16[3,32,32], index: 1, kind: input, shape index: {}]
  %s2 = inlined_call_operand.vmem [shape: f32[3,32], index: 2, kind: input, shape index: {}]
  %s3 = inlined_call_operand.vmem [shape: f32[2,8,32], index: 3, kind: output, shape index: {}]
  %s4 = sld [smem:[#allocation0]]
  $region22: #{audio_sub_forward.2} parent=0
    _
  %s6 = ssub.s32 1, %s4
  %s7 = scalar_select 0, %s6, %s4
  // Predicated region
  $region2: #{audio_sub_forward.2} parent=0 // pred_check
    _
  $region3: #{audio_sub_forward.2} parent=0 // pred_check_branch
    %9 = sbr.rel (0) target = $region5
  $region4: #{audio_sub_forward.2} parent=0 // pred_region
    _
  $region5: #{audio_sub_forward.2} parent=0 // pred_fallthru
    _
  // Predicated region
  $region6: #{audio_sub_forward.2} parent=0 // pred_check
    _
  $region7: #{audio_sub_forward.2} parent=0 // pred_check_branch
    %11 = sbr.rel (0) target = $region9
  $region8: #{audio_sub_forward.2} parent=0 // pred_region
    _
  $region9: #{audio_sub_forward.2} parent=0 // pred_fallthru
    _
  // Predicated region
  $region10: #{audio_sub_forward.2} parent=0 // pred_check
    _
  $region11: #{audio_sub_forward.2} parent=0 // pred_check_branch
    %13 = sbr.rel (0) target = $region13
  $region12: #{audio_sub_forward.2} parent=0 // pred_region
    _
  $region13: #{audio_sub_forward.2} parent=0 // pred_fallthru
    _
  %v15 = vld [vmem:[%s0] sm:$0xff]
  %s16 = scalar_lea.vmem %s0, 32
  %v17 = vld [vmem:[%s16] sm:$0xff]
  %v18 = vpack.c.bf16 %v17, %v15
  %v19 = vld [vmem:[%s1] sm:$0xf]
  %v20 = vld [vmem:[%s1 + $0x4] sm:$0xf]
  %v21 = vld [vmem:[%s1 + $0x8] sm:$0xf]
  %v22 = vld [vmem:[%s1 + $0xc] sm:$0xf]
  %s23 = scalar_lea.vmem %s0, 16
  %v24 = vld [vmem:[%s23] sm:$0xff]
  %s25 = scalar_lea.vmem %s0, 48
  %v26 = vld [vmem:[%s25] sm:$0xff]
  %v27 = vpack.c.bf16 %v26, %v24
  %s28 = scalar_lea.vmem %s1, 16
  %v29 = vld [vmem:[%s28] sm:$0xf]
  %v30 = vld [vmem:[%s28 + $0x4] sm:$0xf]
  %v31 = vld [vmem:[%s28 + $0x8] sm:$0xf]
  %v32 = vld [vmem:[%s28 + $0xc] sm:$0xf]
  %v37 = vunpack.c.l.b16 %v29
  %v38 = vunpack.c.l.b16 %v30
  %v39 = vunpack.c.l.b16 %v31
  %v40 = vunpack.c.l.b16 %v32
  %v41 = vpack.c.b16 %v38, %v37
  %v42 = vpack.c.b16 %v40, %v39
  %vm45 = vcmask 261120
  %v47 = vsel %vm45, %v27, 0
  %49 = vmatpush.bf16.msra.mxu0 0
  %50 = vmatpush.bf16.msra.mxu0 0
  %51 = vmatpush.bf16.msra.mxu0 0
  %52 = vmatpush.bf16.msra.mxu0 0
  %53 = vmatpush.bf16.msra.mxu0 0
  %54 = vmatpush.bf16.msra.mxu0 0
  %55 = vmatpush.bf16.msra.mxu0 %v42
  %56 = vmatpush.bf16.msra.mxu0 %v41
  %57 = vmatmul.bf16.gmra.mxu0 %v47
  %v58 = vpop.f32.mrf.mxu0
  %v59 = vadd.f32 0.0, %v58
  %v60 = vpop.f32.mrf.mxu0
  %v61 = vadd.f32 0.0, %v60
  %62 = vdwg.mxu0
  %v67 = vunpack.c.l.b16 %v19
  %v68 = vunpack.c.l.b16 %v20
  %v69 = vunpack.c.l.b16 %v21
  %v70 = vunpack.c.l.b16 %v22
  %v71 = vpack.c.b16 %v68, %v67
  %v72 = vpack.c.b16 %v70, %v69
  %v76 = vsel %vm45, %v18, 0
  %78 = vmatpush.bf16.msra.mxu0 0
  %79 = vmatpush.bf16.msra.mxu0 0
  %80 = vmatpush.bf16.msra.mxu0 0
  %81 = vmatpush.bf16.msra.mxu0 0
  %82 = vmatpush.bf16.msra.mxu0 0
  %83 = vmatpush.bf16.msra.mxu0 0
  %84 = vmatpush.bf16.msra.mxu0 %v72
  %85 = vmatpush.bf16.msra.mxu0 %v71
  %86 = vmatmul.bf16.gmra.mxu0 %v76
  %v87 = vpop.f32.mrf.mxu0
  %v88 = vadd.f32 %v59, %v87
  %v89 = vpop.f32.mrf.mxu0
  %v90 = vadd.f32 %v61, %v89
  %91 = vdwg.mxu0
  %v92 = vld [vmem:[%s0 + $0x1] sm:$0xff]
  %v93 = vld [vmem:[%s16 + $0x1] sm:$0xff]
  %v94 = vpack.c.bf16 %v93, %v92
  %s95 = scalar_lea.vmem %s1, 32
  %v96 = vld [vmem:[%s95] sm:$0xf]
  %v97 = vld [vmem:[%s95 + $0x4] sm:$0xf]
  %v98 = vld [vmem:[%s95 + $0x8] sm:$0xf]
  %v99 = vld [vmem:[%s95 + $0xc] sm:$0xf]
  %v104 = vunpack.c.l.b16 %v96
  %v105 = vunpack.c.l.b16 %v97
  %v106 = vunpack.c.l.b16 %v98
  %v107 = vunpack.c.l.b16 %v99
  %v108 = vpack.c.b16 %v105, %v104
  %v109 = vpack.c.b16 %v107, %v106
  %v113 = vsel %vm45, %v94, 0
  %115 = vmatpush.bf16.msra.mxu0 0
  %116 = vmatpush.bf16.msra.mxu0 0
  %117 = vmatpush.bf16.msra.mxu0 0
  %118 = vmatpush.bf16.msra.mxu0 0
  %119 = vmatpush.bf16.msra.mxu0 0
  %120 = vmatpush.bf16.msra.mxu0 0
  %121 = vmatpush.bf16.msra.mxu0 %v109
  %122 = vmatpush.bf16.msra.mxu0 %v108
  %123 = vmatmul.bf16.gmra.mxu0 %v113
  %v124 = vpop.f32.mrf.mxu0
  %v125 = vadd.f32 0.0, %v124
  %v126 = vpop.f32.mrf.mxu0
  %v127 = vadd.f32 0.0, %v126
  %128 = vdwg.mxu0
  %v129 = vadd.f32 %v88, %v125
  %v130 = vadd.f32 %v90, %v127
  %v131 = vld [vmem:[%s2] sm:$0x7]
  %v132 = vperm.slane %v131, 0
  %v133 = vadd.f32 %v129, %v132
  %v134 = vadd.f32 %v130, %v132
  %v135 = vmax.f32 %v133, 0.0
  %v136 = vmax.f32 %v134, 0.0
  %v137 = vsel %vm45, %v135, 0.0
  %138 = vadd.xlane.f32.xlu0 %v137
  %v139 = vpop.xlane.xlu0 %138
  %v140 = vsel %vm45, %v136, 0.0
  %141 = vadd.xlane.f32.xlu0 %v140
  %v142 = vpop.xlane.xlu0 %141
  %v143 = vrcp.pop 32.0
  %v144 = vmul.f32 32.0, %v143
  %v145 = vsub.f32 1.0, %v144
  %v146 = vmul.f32 %v143, %v145
  %v147 = vadd.f32 %v143, %v146
  %vm148 = vweird.f32 %v143
  %v149 = vsel %vm148, %v143, %v147
  %v150 = vmul.f32 %v139, %v149
  %v151 = vmul.f32 %v142, %v149
  %v152 = vsub.f32 %v135, %v150
  %v153 = vsub.f32 %v136, %v151
  %v154 = vmul.f32 %v152, %v152
  %v155 = vmul.f32 %v153, %v153
  %v156 = vsel %vm45, %v154, 0.0
  %157 = vadd.xlane.f32.xlu0 %v156
  %v158 = vpop.xlane.xlu0 %157
  %v159 = vsel %vm45, %v155, 0.0
  %160 = vadd.xlane.f32.xlu0 %v159
  %v161 = vpop.xlane.xlu0 %160
  %v162 = vmul.f32 %v158, %v149
  %v163 = vmul.f32 %v161, %v149
  %v164 = vadd.f32 %v162, 1e-05
  %v165 = vadd.f32 %v163, 1e-05
  %v166 = vrsqrt.pop %v164
  %v167 = vmul.f32 %v166, %v164
  %v168 = vmul.f32 %v167, %v166
  %v169 = vmul.f32 0.5, %v168
  %v170 = vsub.f32 1.5, %v169
  %v171 = vmul.f32 %v166, %v170
  %vm172 = vweird.f32 %v164
  %vm173 = vweird.f32 %v166
  %vm174 = vmor %vm172, %vm173
  %v175 = vsel %vm174, %v166, %v171
  %v176 = vrsqrt.pop %v165
  %v177 = vmul.f32 %v176, %v165
  %v178 = vmul.f32 %v177, %v176
  %v179 = vmul.f32 0.5, %v178
  %v180 = vsub.f32 1.5, %v179
  %v181 = vmul.f32 %v176, %v180
  %vm182 = vweird.f32 %v165
  %vm183 = vweird.f32 %v176
  %vm184 = vmor %vm182, %vm183
  %v185 = vsel %vm184, %v176, %v181
  %v186 = vmul.f32 %v152, %v175
  %v187 = vmul.f32 %v153, %v185
  %v188 = vperm.slane %v131, 1
  %v189 = vmul.f32 %v186, %v188
  %v190 = vmul.f32 %v187, %v188
  %v191 = vperm.slane %v131, 2
  %v192 = vadd.f32 %v189, %v191
  %v193 = vadd.f32 %v190, %v191
  %194 = vst.msk [vmem:[%s3] sm:$0xff] %vm45, %v192
  %s195 = scalar_lea.vmem %s3, 8
  %196 = vst.msk [vmem:[%s195] sm:$0xff] %vm45, %v193
  // Predicated region
  $region14: #{audio_sub_forward.2} parent=0 // pred_check
    _
  $region15: #{audio_sub_forward.2} parent=0 // pred_check_branch
    %198 = sbr.rel (0) target = $region17
  $region16: #{audio_sub_forward.2} parent=0 // pred_region
    _
  $region17: #{audio_sub_forward.2} parent=0 // pred_fallthru
    _
  // Predicated region
  $region18: #{audio_sub_forward.2} parent=0 // pred_check
    _
  $region19: #{audio_sub_forward.2} parent=0 // pred_check_branch
    %200 = sbr.rel (0) target = $region21
  $region20: #{audio_sub_forward.2} parent=0 // pred_region
    _
  $region21: #{audio_sub_forward.2} parent=0 // pred_fallthru
    _

// kernel: audio_sub_forward.3
$region0: #{audio_sub_forward.3}
  #allocation0 [shape = 'u32[]', space=smem, size = 0x4, offset = 0x4, fixed_abs, tag = 'smem constant byte address 0x4 - core index']
  #allocation1 [shape = 'u32[72,128]{1,0:T(1,128)}', space=vmem, size = 0x9000, scoped, tag = 'internal scratch']
  %s0 = inlined_call_operand.vmem [shape: f32[2,1,16,64], index: 0, kind: input, shape index: {}]
  %s1 = inlined_call_operand.vmem [shape: bf16[1,64,32], index: 1, kind: input, shape index: {}]
  %s2 = inlined_call_operand.vmem [shape: f32[3,32], index: 2, kind: input, shape index: {}]
  %s3 = inlined_call_operand.hbm [shape: f32[2,16,32], index: 3, kind: output, shape index: {}]
  %s4 = sld [smem:[#allocation0]]
  $region22: #{audio_sub_forward.3} parent=0
    _
  %s6 = ssub.s32 1, %s4
  %s7 = scalar_select 0, %s6, %s4
  $region1: #{audio_sub_forward.3} parent=0
    #allocation2 [shape = 'u8[16384]{0}', space=vmem, size = 0x4000, scoped, tag = 'output window, operand 0, single buffered']
    #allocation3 [shape = 's32[1]{0}', space=sflag, size = 0x4, scoped, tag = 'scoped memory for audio_sub_forward.3']
    %8 = vsyncpa [#allocation3], 0
    // Predicated region
    $region2: #{audio_sub_forward.3} parent=1 // pred_check
      _
    $region3: #{audio_sub_forward.3} parent=1 // pred_check_branch
      %10 = sbr.rel (0) target = $region5
    $region4: #{audio_sub_forward.3} parent=1 // pred_region
      _
    $region5: #{audio_sub_forward.3} parent=1 // pred_fallthru
      _
    // Predicated region
    $region6: #{audio_sub_forward.3} parent=1 // pred_check
      _
    $region7: #{audio_sub_forward.3} parent=1 // pred_check_branch
      %12 = sbr.rel (0) target = $region9
    $region8: #{audio_sub_forward.3} parent=1 // pred_region
      _
    $region9: #{audio_sub_forward.3} parent=1 // pred_fallthru
      _
    // Predicated region
    $region10: #{audio_sub_forward.3} parent=1 // pred_check
      _
    $region11: #{audio_sub_forward.3} parent=1 // pred_check_branch
      %14 = sbr.rel (0) target = $region13
    $region12: #{audio_sub_forward.3} parent=1 // pred_region
      _
    $region13: #{audio_sub_forward.3} parent=1 // pred_fallthru
      _
    %v16 = vld [vmem:[%s0] sm:$0xff]
    %v17 = vld [vmem:[%s0 + $0x8] sm:$0xff]
    %s18 = scalar_lea.vmem %s0, 16
    %v19 = vld [vmem:[%s18] sm:$0xff]
    %v20 = vld [vmem:[%s18 + $0x8] sm:$0xff]
    %v21 = vpack.c.bf16 %v17, %v16
    %v22 = vpack.c.bf16 %v20, %v19
    %v23 = vld [vmem:[%s1] sm:$0xf]
    %v24 = vld [vmem:[%s1 + $0x4] sm:$0xf]
    %v25 = vld [vmem:[%s1 + $0x8] sm:$0xf]
    %v26 = vld [vmem:[%s1 + $0xc] sm:$0xf]
    %v27 = vld [vmem:[%s1 + $0x10] sm:$0xf]
    %v28 = vld [vmem:[%s1 + $0x14] sm:$0xf]
    %v29 = vld [vmem:[%s1 + $0x18] sm:$0xf]
    %v30 = vld [vmem:[%s1 + $0x1c] sm:$0xf]
    %v31 = vld [vmem:[%s2] sm:$0x7]
    %v32 = vperm.slane %v31, 0
    %v41 = vunpack.c.l.b16 %v23
    %v42 = vunpack.c.l.b16 %v24
    %v43 = vunpack.c.l.b16 %v25
    %v44 = vunpack.c.l.b16 %v26
    %v45 = vunpack.c.l.b16 %v27
    %v46 = vunpack.c.l.b16 %v28
    %v47 = vunpack.c.l.b16 %v29
    %v48 = vunpack.c.l.b16 %v30
    %v49 = vpack.c.b16 %v42, %v41
    %v50 = vpack.c.b16 %v44, %v43
    %v51 = vpack.c.b16 %v46, %v45
    %v52 = vpack.c.b16 %v48, %v47
    %vm57 = vcmask 523264
    %v59 = vsel %vm57, %v21, 0
    %v62 = vsel %vm57, %v22, 0
    %64 = vmatpush.bf16.msra.mxu0 0
    %65 = vmatpush.bf16.msra.mxu0 0
    %66 = vmatpush.bf16.msra.mxu0 0
    %67 = vmatpush.bf16.msra.mxu0 0
    %68 = vmatpush.bf16.msra.mxu0 %v52
    %69 = vmatpush.bf16.msra.mxu0 %v51
    %70 = vmatpush.bf16.msra.mxu0 %v50
    %71 = vmatpush.bf16.msra.mxu0 %v49
    %72 = vmatmul.bf16.gmra.mxu0 %v59
    %v73 = vpop.f32.mrf.mxu0
    %v74 = vadd.f32 %v32, %v73
    %v75 = vpop.f32.mrf.mxu0
    %v76 = vadd.f32 %v32, %v75
    %77 = vmatmul.bf16.gmra.mxu0 %v62
    %v78 = vpop.f32.mrf.mxu0
    %v79 = vadd.f32 %v32, %v78
    %v80 = vpop.f32.mrf.mxu0
    %v81 = vadd.f32 %v32, %v80
    %82 = vdwg.mxu0
    %v83 = vmax.f32 %v74, 0.0
    %v84 = vmax.f32 %v76, 0.0
    %v85 = vmax.f32 %v79, 0.0
    %v86 = vmax.f32 %v81, 0.0
    %vm87 = vcmask 261120
    %v88 = vsel %vm87, %v83, 0.0
    %89 = vadd.xlane.f32.xlu0 %v88
    %v90 = vpop.xlane.xlu0 %89
    %v91 = vsel %vm87, %v84, 0.0
    %92 = vadd.xlane.f32.xlu0 %v91
    %v93 = vpop.xlane.xlu0 %92
    %v94 = vsel %vm87, %v85, 0.0
    %95 = vadd.xlane.f32.xlu0 %v94
    %v96 = vpop.xlane.xlu0 %95
    %v97 = vsel %vm87, %v86, 0.0
    %98 = vadd.xlane.f32.xlu0 %v97
    %v99 = vpop.xlane.xlu0 %98
    %v100 = vrcp.pop 32.0
    %v101 = vmul.f32 32.0, %v100
    %v102 = vsub.f32 1.0, %v101
    %v103 = vmul.f32 %v100, %v102
    %v104 = vadd.f32 %v100, %v103
    %vm105 = vweird.f32 %v100
    %v106 = vsel %vm105, %v100, %v104
    %v107 = vmul.f32 %v90, %v106
    %v108 = vmul.f32 %v93, %v106
    %v109 = vmul.f32 %v96, %v106
    %v110 = vmul.f32 %v99, %v106
    %v111 = vsub.f32 %v83, %v107
    %v112 = vsub.f32 %v84, %v108
    %v113 = vsub.f32 %v85, %v109
    %v114 = vsub.f32 %v86, %v110
    %v115 = vmul.f32 %v111, %v111
    %v116 = vmul.f32 %v112, %v112
    %v117 = vmul.f32 %v113, %v113
    %v118 = vmul.f32 %v114, %v114
    %v119 = vsel %vm87, %v115, 0.0
    %120 = vadd.xlane.f32.xlu0 %v119
    %v121 = vpop.xlane.xlu0 %120
    %v122 = vsel %vm87, %v116, 0.0
    %123 = vadd.xlane.f32.xlu0 %v122
    %v124 = vpop.xlane.xlu0 %123
    %v125 = vsel %vm87, %v117, 0.0
    %126 = vadd.xlane.f32.xlu0 %v125
    %v127 = vpop.xlane.xlu0 %126
    %v128 = vsel %vm87, %v118, 0.0
    %129 = vadd.xlane.f32.xlu0 %v128
    %v130 = vpop.xlane.xlu0 %129
    %v131 = vmul.f32 %v121, %v106
    %v132 = vmul.f32 %v124, %v106
    %v133 = vmul.f32 %v127, %v106
    %v134 = vmul.f32 %v130, %v106
    %v135 = vadd.f32 %v131, 1e-05
    %v136 = vadd.f32 %v132, 1e-05
    %v137 = vadd.f32 %v133, 1e-05
    %v138 = vadd.f32 %v134, 1e-05
    %v139 = vrsqrt.pop %v135
    %v140 = vmul.f32 %v139, %v135
    %v141 = vmul.f32 %v140, %v139
    %v142 = vmul.f32 0.5, %v141
    %v143 = vsub.f32 1.5, %v142
    %v144 = vmul.f32 %v139, %v143
    %vm145 = vweird.f32 %v135
    %vm146 = vweird.f32 %v139
    %vm147 = vmor %vm145, %vm146
    %v148 = vsel %vm147, %v139, %v144
    %v149 = vrsqrt.pop %v136
    %v150 = vmul.f32 %v149, %v136
    %v151 = vmul.f32 %v150, %v149
    %v152 = vmul.f32 0.5, %v151
    %v153 = vsub.f32 1.5, %v152
    %v154 = vmul.f32 %v149, %v153
    %vm155 = vweird.f32 %v136
    %vm156 = vweird.f32 %v149
    %vm157 = vmor %vm155, %vm156
    %v158 = vsel %vm157, %v149, %v154
    %v159 = vrsqrt.pop %v137
    %v160 = vmul.f32 %v159, %v137
    %v161 = vmul.f32 %v160, %v159
    %v162 = vmul.f32 0.5, %v161
    %v163 = vsub.f32 1.5, %v162
    %v164 = vmul.f32 %v159, %v163
    %vm165 = vweird.f32 %v137
    %vm166 = vweird.f32 %v159
    %vm167 = vmor %vm165, %vm166
    %v168 = vsel %vm167, %v159, %v164
    %v169 = vrsqrt.pop %v138
    %v170 = vmul.f32 %v169, %v138
    %v171 = vmul.f32 %v170, %v169
    %v172 = vmul.f32 0.5, %v171
    %v173 = vsub.f32 1.5, %v172
    %v174 = vmul.f32 %v169, %v173
    %vm175 = vweird.f32 %v138
    %vm176 = vweird.f32 %v169
    %vm177 = vmor %vm175, %vm176
    %v178 = vsel %vm177, %v169, %v174
    %v179 = vmul.f32 %v111, %v148
    %v180 = vmul.f32 %v112, %v158
    %v181 = vmul.f32 %v113, %v168
    %v182 = vmul.f32 %v114, %v178
    %v183 = vperm.slane %v31, 1
    %v184 = vmul.f32 %v179, %v183
    %v185 = vmul.f32 %v180, %v183
    %v186 = vmul.f32 %v181, %v183
    %v187 = vmul.f32 %v182, %v183
    %v188 = vperm.slane %v31, 2
    %v189 = vadd.f32 %v184, %v188
    %v190 = vadd.f32 %v185, %v188
    %v191 = vadd.f32 %v186, %v188
    %v192 = vadd.f32 %v187, %v188
    %193 = vst.msk [vmem:[#allocation2] sm:$0xff] %vm87, %v189
    %194 = vst.msk [vmem:[#allocation2 + $0x8] sm:$0xff] %vm87, %v190
    %s195 = scalar_lea.vmem [#allocation2], 16
    %196 = vst.msk [vmem:[%s195] sm:$0xff] %vm87, %v191
    %197 = vst.msk [vmem:[%s195 + $0x8] sm:$0xff] %vm87, %v192
    // Predicated region
    $region14: #{audio_sub_forward.3} parent=1 // pred_check
      _
    $region15: #{audio_sub_forward.3} parent=1 // pred_check_branch
      %199 = sbr.rel (0) target = $region17
    $region16: #{audio_sub_forward.3} parent=1 // pred_region
      %201 = vsyncadd [#allocation3], 0
      %s202 = sshll.u32 [#allocation2], 4
      %s203 = int_to_ptr.vmem [resolvable:$true] %s202
      %s204 = sshll.u32 %s3, 4
      %s205 = int_to_ptr.hbm [resolvable:$true] %s204
      %210 = dma.vmem_to_hbm [thread:$0]  %s203, 512, %s205, [#allocation3], 128, 128, 8
    $region17: #{audio_sub_forward.3} parent=1 // pred_fallthru
      _
    // Predicated region
    $region18: #{audio_sub_forward.3} parent=1 // pred_check
      _
    $region19: #{audio_sub_forward.3} parent=1 // pred_check_branch
      %212 = sbr.rel (0) target = $region21
    $region20: #{audio_sub_forward.3} parent=1 // pred_region
      %214 = dma.done [#allocation3], 512
    $region21: #{audio_sub_forward.3} parent=1 // pred_fallthru
      _
    %215 = vsyncpa [#allocation3], 1

</llo_original>
